<compile_context>
chip_gen: v7x
topology: tpu7x:2x2x1
jax: 0.10.0
libtpu: 0.0.40
codegen_flags: <defaults>
</compile_context>

<pallas_src>
import functools

import jax
import jax.numpy as jnp
from jax.experimental import pallas as pl
from jax.experimental.pallas import tpu as pltpu


def _round_up(n, m):
    return ((n + m - 1) // m) * m


def mlp_kernel(x_ref, w1_ref, w2_ref, o_ref):
    # x: (tb, D_in), w1t: (D_in, Hp), w2t: (Hp, Op), o: (tb, Op) — all f32,
    # MXU-natural (M,K)x(K,N) layouts, fully fused matmul->ReLU->matmul.
    h = jnp.dot(x_ref[...], w1_ref[...], preferred_element_type=jnp.float32)
    h = jnp.maximum(h, 0.0)                                   # ReLU (VPU)
    o_ref[...] = jnp.dot(h, w2_ref[...], preferred_element_type=jnp.float32)


def _pick_batch_tile(B):
    """Batch tile: single block for small B; split (megacore) for larger B,
    capped so double-buffered f32 x tiles fit v5e's 16 MiB scoped VMEM."""
    Bp = _round_up(B, 8)
    if Bp <= 256:
        return Bp
    return min(1024, _round_up(pl.cdiv(Bp, 2), 8))


@functools.partial(jax.jit, static_argnames=("d_out",))
def _forward_impl(x, w1t, w2t, *, d_out):
    x = x.astype(jnp.float32)
    B, D_in = x.shape
    _, Hp = w1t.shape
    _, Op = w2t.shape

    tb = _pick_batch_tile(B)
    grid = (pl.cdiv(B, tb),)

    flops = 2 * B * (D_in * Hp + Hp * Op)
    bytes_accessed = 4 * (B * D_in + D_in * Hp + Hp * Op + B * Op)

    yp = pl.pallas_call(
        mlp_kernel,
        out_shape=jax.ShapeDtypeStruct((B, Op), jnp.float32),
        grid=grid,
        in_specs=[
            # x: lane dim = full D_in extent (no host-side padding needed),
            # sublane tile tb is a multiple of 8.
            pl.BlockSpec((tb, D_in), lambda i: (i, 0)),
            # Weights resident across the (batch) grid.
            pl.BlockSpec((D_in, Hp), lambda i: (0, 0)),
            pl.BlockSpec((Hp, Op), lambda i: (0, 0)),
        ],
        out_specs=pl.BlockSpec((tb, Op), lambda i: (i, 0)),
        compiler_params=pltpu.CompilerParams(
            dimension_semantics=("parallel",)),
        cost_estimate=pl.CostEstimate(
            flops=flops, transcendentals=0, bytes_accessed=bytes_accessed),
    )(x, w1t, w2t)

    # Strip output-column padding (fused into the same jit).
    return yp[:, :d_out]


class PallasNet:
    """relu(x @ w1.T) @ w2.T with PyTorch nn.Linear weight convention.

    w1: (H, D_in), w2: (D_out, H). Weights are padded to 128-lane multiples
    and pre-transposed ONCE at construction; the per-call path is just the
    jitted pallas_call + slice.
    """

    def __init__(self, w1, w2):
        H, D_in = w1.shape
        D_out, _ = w2.shape
        Hp = _round_up(H, 128)     # 100 -> 128
        Op = _round_up(D_out, 128)  # 10  -> 128
        self.d_out = D_out
        self.w1t = jax.device_put(
            jnp.zeros((D_in, Hp), jnp.float32)
            .at[:, :H].set(w1.T.astype(jnp.float32)))
        self.w2t = jax.device_put(
            jnp.zeros((Hp, Op), jnp.float32)
            .at[:H, :D_out].set(w2.T.astype(jnp.float32)))

    def __call__(self, x):
        return _forward_impl(x, self.w1t, self.w2t, d_out=self.d_out)


if __name__ == "__main__":
    # Module dims from the reference script: Net(1000, 100, 10), batch 64.
    B, D_in, H, D_out = 64, 1000, 100, 10

    key = jax.random.PRNGKey(0)
    kx, k1, k2 = jax.random.split(key, 3)

    x = jax.random.normal(kx, (B, D_in), dtype=jnp.float32)
    # Deterministic parameter init (Kaiming-uniform-ish scale like nn.Linear).
    w1 = jax.random.uniform(k1, (H, D_in), dtype=jnp.float32,
                            minval=-1.0, maxval=1.0) * (1.0 / (D_in ** 0.5))
    w2 = jax.random.uniform(k2, (D_out, H), dtype=jnp.float32,
                            minval=-1.0, maxval=1.0) * (1.0 / (H ** 0.5))

    model = PallasNet(w1, w2)
    z_pred = model(x)
    jax.block_until_ready(z_pred)

    # Reference check in plain JAX (torch semantics: relu(x @ W1^T) @ W2^T).
    z_ref = jnp.maximum(x @ w1.T, 0.0) @ w2.T
    assert z_pred.shape == (B, D_out)
    assert jnp.allclose(z_pred, z_ref, atol=1e-4, rtol=1e-4)

    print("KERNEL_OK")
</pallas_src>

<mosaic_0001>
module attributes {stable_mosaic.version = 11 : i64} {
  func.func @mlp_kernel(%arg0: i32, %arg1: memref<64x1000xf32, #tpu.memory_space<vmem>>, %arg2: memref<1000x128xf32, #tpu.memory_space<vmem>>, %arg3: memref<128x128xf32, #tpu.memory_space<vmem>>, %arg4: memref<64x128xf32, #tpu.memory_space<vmem>>) attributes {dimension_semantics = [#tpu.dimension_semantics<parallel>], iteration_bounds = array<i64: 1>, scalar_prefetch = 0 : i64, scratch_operands = 0 : i64, tpu.core_type = #tpu.core_type<tc>, window_params = [{transform_indices = @transform_0, window_bounds = array<i64: 64, 1000>}, {pipeline_mode = #tpu.pipeline_mode<synchronous>, transform_indices = @transform_1, window_bounds = array<i64: 1000, 128>}, {pipeline_mode = #tpu.pipeline_mode<synchronous>, transform_indices = @transform_2, window_bounds = array<i64: 128, 128>}, {transform_indices = @transform_3, window_bounds = array<i64: 64, 128>}]} {
    %c0 = arith.constant 0 : index
    %c0_0 = arith.constant 0 : index
    %0 = vector.load %arg1[%c0, %c0_0] : memref<64x1000xf32, #tpu.memory_space<vmem>>, vector<64x1000xf32>
    %c0_1 = arith.constant 0 : index
    %c0_2 = arith.constant 0 : index
    %1 = vector.load %arg2[%c0_1, %c0_2] : memref<1000x128xf32, #tpu.memory_space<vmem>>, vector<1000x128xf32>
    %cst = arith.constant dense<0.000000e+00> : vector<64x128xf32>
    %2 = tpu.matmul %0, %1, %cst {dimension_numbers = #tpu.dot_dimension_numbers<[1], [0], [0], [1], [0, 0, 1, 1], [], []>} : vector<64x1000xf32>, vector<1000x128xf32>, vector<64x128xf32> -> vector<64x128xf32>
    %cst_3 = arith.constant 0.000000e+00 : f32
    %3 = vector.broadcast %cst_3 : f32 to vector<64x128xf32>
    %4 = arith.maximumf %2, %3 : vector<64x128xf32>
    %c0_4 = arith.constant 0 : index
    %c0_5 = arith.constant 0 : index
    %5 = vector.load %arg3[%c0_4, %c0_5] : memref<128x128xf32, #tpu.memory_space<vmem>>, vector<128x128xf32>
    %cst_6 = arith.constant dense<0.000000e+00> : vector<64x128xf32>
    %6 = tpu.matmul %4, %5, %cst_6 {dimension_numbers = #tpu.dot_dimension_numbers<[1], [0], [0], [1], [0, 0, 1, 1], [], []>} : vector<64x128xf32>, vector<128x128xf32>, vector<64x128xf32> -> vector<64x128xf32>
    %c0_7 = arith.constant 0 : index
    %c0_8 = arith.constant 0 : index
    %7 = vector.load %arg4[%c0_7, %c0_8] : memref<64x128xf32, #tpu.memory_space<vmem>>, vector<64x128xf32>
    tpu.vector_store %arg4[%c0_7, %c0_8], %6 {strides = array<i32>} : memref<64x128xf32, #tpu.memory_space<vmem>>, vector<64x128xf32>,
    return
  }
  func.func @transform_0(%arg0: i32) -> (i32, i32) {
    %c0_i32 = arith.constant 0 : i32
    %c0_i32_0 = arith.constant 0 : i32
    return %arg0, %c0_i32 : i32, i32
  }
  func.func @transform_1(%arg0: i32) -> (i32, i32) {
    %c0_i32 = arith.constant 0 : i32
    %c0_i32_0 = arith.constant 0 : i32
    %c0_i32_1 = arith.constant 0 : i32
    return %c0_i32, %c0_i32_0 : i32, i32
  }
  func.func @transform_2(%arg0: i32) -> (i32, i32) {
    %c0_i32 = arith.constant 0 : i32
    %c0_i32_0 = arith.constant 0 : i32
    %c0_i32_1 = arith.constant 0 : i32
    return %c0_i32, %c0_i32_0 : i32, i32
  }
  func.func @transform_3(%arg0: i32) -> (i32, i32) {
    %c0_i32 = arith.constant 0 : i32
    %c0_i32_0 = arith.constant 0 : i32
    return %arg0, %c0_i32 : i32, i32
  }
}

</mosaic_0001>

<llo_original>
// kernel: _forward_impl.1
$region0: #{_forward_impl.1}
  #allocation0 [shape = 'u32[]', space=smem, size = 0x4, offset = 0x4, fixed_abs, tag = 'smem constant byte address 0x4 - core index']
  #allocation1 [shape = 'u32[144,128]{1,0:T(1,128)}', space=vmem, size = 0x12000, scoped, tag = 'internal scratch']
  %s0 = inlined_call_operand.hbm [shape: f32[64,1000], index: 0, kind: input, shape index: {}]
  %s1 = inlined_call_operand.hbm [shape: f32[1000,128], index: 1, kind: input, shape index: {}]
  %s2 = inlined_call_operand.hbm [shape: f32[128,128], index: 2, kind: input, shape index: {}]
  %s3 = inlined_call_operand.vmem [shape: f32[64,128], index: 3, kind: output, shape index: {}]
  %s4 = sld [smem:[#allocation0]]
  $region34: #{_forward_impl.1} parent=0
    _
  %s6 = ssub.s32 1, %s4
  %s7 = scalar_select 0, %s6, %s4
  $region1: #{_forward_impl.1} parent=0
    #allocation2 [shape = 'u8[262144]{0}', space=vmem, size = 0x40000, scoped, tag = 'input window, operand 0, single buffered']
    #allocation3 [shape = 's32[1]{0}', space=sflag, size = 0x4, scoped, tag = 'scoped memory for _forward_impl.1']
    #allocation4 [shape = 'u8[512000]{0}', space=vmem, size = 0x7d000, scoped, tag = 'input window, operand 1, single buffered']
    #allocation5 [shape = 's32[1]{0}', space=sflag, size = 0x4, scoped, tag = 'scoped memory for _forward_impl.1']
    #allocation6 [shape = 'u8[65536]{0}', space=vmem, size = 0x10000, scoped, tag = 'input window, operand 2, single buffered']
    %8 = vsyncpa [#allocation3], 0
    %9 = vsyncpa [#allocation5], 0
    // Predicated region
    $region2: #{_forward_impl.1} parent=1 // pred_check
      _
    $region3: #{_forward_impl.1} parent=1 // pred_check_branch
      %11 = sbr.rel (0) target = $region5
    $region4: #{_forward_impl.1} parent=1 // pred_region
      %s13 = ssub.s32 8192, 8192
      %14 = vsyncadd [#allocation3], %s13
      %s15 = sshll.u32 [#allocation2], 4
      %s16 = int_to_ptr.vmem [resolvable:$true] %s15
      %21 = dma.hbm_to_vmem [thread:$0]  %s0, 8192, %s16, [#allocation3], 1024, 1024, 64
    $region5: #{_forward_impl.1} parent=1 // pred_fallthru
      _
    // Predicated region
    $region6: #{_forward_impl.1} parent=1 // pred_check
      _
    $region7: #{_forward_impl.1} parent=1 // pred_check_branch
      %23 = sbr.rel (0) target = $region9
    $region8: #{_forward_impl.1} parent=1 // pred_region
      %s25 = ssub.s32 16000, 16000
      %26 = vsyncadd [#allocation5], %s25
      %s27 = sshll.u32 [#allocation4], 4
      %s28 = int_to_ptr.vmem [resolvable:$true] %s27
      %33 = dma.hbm_to_vmem [thread:$0]  %s1, 16000, %s28, [#allocation5], 128, 128, 8
    $region9: #{_forward_impl.1} parent=1 // pred_fallthru
      _
    // Predicated region
    $region10: #{_forward_impl.1} parent=1 // pred_check
      _
    $region11: #{_forward_impl.1} parent=1 // pred_check_branch
      %35 = sbr.rel (0) target = $region13
    $region12: #{_forward_impl.1} parent=1 // pred_region
      %s37 = ssub.s32 2048, 2048
      %38 = vsyncadd [#allocation5], %s37
      %s39 = sshll.u32 [#allocation6], 4
      %s40 = int_to_ptr.vmem [resolvable:$true] %s39
      %45 = dma.hbm_to_vmem [thread:$0]  %s2, 2048, %s40, [#allocation5], 128, 128, 8
    $region13: #{_forward_impl.1} parent=1 // pred_fallthru
      _
    // Predicated region
    $region14: #{_forward_impl.1} parent=1 // pred_check
      _
    $region15: #{_forward_impl.1} parent=1 // pred_check_branch
      %47 = sbr.rel (0) target = $region17
    $region16: #{_forward_impl.1} parent=1 // pred_region
      %48 = dma.done [#allocation3], 8192
    $region17: #{_forward_impl.1} parent=1 // pred_fallthru
      _
    // Predicated region
    $region18: #{_forward_impl.1} parent=1 // pred_check
      _
    $region19: #{_forward_impl.1} parent=1 // pred_check_branch
      %50 = sbr.rel (0) target = $region21
    $region20: #{_forward_impl.1} parent=1 // pred_region
      %51 = dma.done [#allocation5], 16000
    $region21: #{_forward_impl.1} parent=1 // pred_fallthru
      _
    // Predicated region
    $region22: #{_forward_impl.1} parent=1 // pred_check
      _
    $region23: #{_forward_impl.1} parent=1 // pred_check_branch
      %53 = sbr.rel (0) target = $region25
    $region24: #{_forward_impl.1} parent=1 // pred_region
      %54 = dma.done [#allocation5], 2048
    $region25: #{_forward_impl.1} parent=1 // pred_fallthru
      _
    %v55 = vld [vmem:[#allocation2] sm:$0xff]
    %v56 = vld [vmem:[#allocation2 + $0x8] sm:$0xff]
    %v57 = vld [vmem:[#allocation2 + $0x10] sm:$0xff]
    %v58 = vld [vmem:[#allocation2 + $0x18] sm:$0xff]
    %v59 = vld [vmem:[#allocation2 + $0x20] sm:$0xff]
    %v60 = vld [vmem:[#allocation2 + $0x28] sm:$0xff]
    %v61 = vld [vmem:[#allocation2 + $0x30] sm:$0xff]
    %v62 = vld [vmem:[#allocation2 + $0x38] sm:$0xff]
    %v63 = vld [vmem:[#allocation2 + $0x40] sm:$0xff]
    %v64 = vld [vmem:[#allocation2 + $0x48] sm:$0xff]
    %v65 = vld [vmem:[#allocation2 + $0x50] sm:$0xff]
    %v66 = vld [vmem:[#allocation2 + $0x58] sm:$0xff]
    %v67 = vld [vmem:[#allocation2 + $0x60] sm:$0xff]
    %v68 = vld [vmem:[#allocation2 + $0x68] sm:$0xff]
    %v69 = vld [vmem:[#allocation2 + $0x70] sm:$0xff]
    %v70 = vld [vmem:[#allocation2 + $0x78] sm:$0xff]
    %v71 = vld [vmem:[#allocation2 + $0x80] sm:$0xff]
    %v72 = vld [vmem:[#allocation2 + $0x88] sm:$0xff]
    %v73 = vld [vmem:[#allocation2 + $0x90] sm:$0xff]
    %v74 = vld [vmem:[#allocation2 + $0x98] sm:$0xff]
    %v75 = vld [vmem:[#allocation2 + $0xa0] sm:$0xff]
    %v76 = vld [vmem:[#allocation2 + $0xa8] sm:$0xff]
    %v77 = vld [vmem:[#allocation2 + $0xb0] sm:$0xff]
    %v78 = vld [vmem:[#allocation2 + $0xb8] sm:$0xff]
    %v79 = vld [vmem:[#allocation2 + $0xc0] sm:$0xff]
    %v80 = vld [vmem:[#allocation2 + $0xc8] sm:$0xff]
    %v81 = vld [vmem:[#allocation2 + $0xd0] sm:$0xff]
    %v82 = vld [vmem:[#allocation2 + $0xd8] sm:$0xff]
    %v83 = vld [vmem:[#allocation2 + $0xe0] sm:$0xff]
    %v84 = vld [vmem:[#allocation2 + $0xe8] sm:$0xff]
    %v85 = vld [vmem:[#allocation2 + $0xf0] sm:$0xff]
    %v86 = vld [vmem:[#allocation2 + $0xf8] sm:$0xff]
    %v87 = vld [vmem:[#allocation2 + $0x100] sm:$0xff]
    %v88 = vld [vmem:[#allocation2 + $0x108] sm:$0xff]
    %v89 = vld [vmem:[#allocation2 + $0x110] sm:$0xff]
    %v90 = vld [vmem:[#allocation2 + $0x118] sm:$0xff]
    %v91 = vld [vmem:[#allocation2 + $0x120] sm:$0xff]
    %v92 = vld [vmem:[#allocation2 + $0x128] sm:$0xff]
    %v93 = vld [vmem:[#allocation2 + $0x130] sm:$0xff]
    %v94 = vld [vmem:[#allocation2 + $0x138] sm:$0xff]
    %v95 = vld [vmem:[#allocation2 + $0x140] sm:$0xff]
    %v96 = vld [vmem:[#allocation2 + $0x148] sm:$0xff]
    %v97 = vld [vmem:[#allocation2 + $0x150] sm:$0xff]
    %v98 = vld [vmem:[#allocation2 + $0x158] sm:$0xff]
    %v99 = vld [vmem:[#allocation2 + $0x160] sm:$0xff]
    %v100 = vld [vmem:[#allocation2 + $0x168] sm:$0xff]
    %v101 = vld [vmem:[#allocation2 + $0x170] sm:$0xff]
    %v102 = vld [vmem:[#allocation2 + $0x178] sm:$0xff]
    %v103 = vld [vmem:[#allocation2 + $0x180] sm:$0xff]
    %v104 = vld [vmem:[#allocation2 + $0x188] sm:$0xff]
    %v105 = vld [vmem:[#allocation2 + $0x190] sm:$0xff]
    %v106 = vld [vmem:[#allocation2 + $0x198] sm:$0xff]
    %v107 = vld [vmem:[#allocation2 + $0x1a0] sm:$0xff]
    %v108 = vld [vmem:[#allocation2 + $0x1a8] sm:$0xff]
    %v109 = vld [vmem:[#allocation2 + $0x1b0] sm:$0xff]
    %v110 = vld [vmem:[#allocation2 + $0x1b8] sm:$0xff]
    %v111 = vld [vmem:[#allocation2 + $0x1c0] sm:$0xff]
    %v112 = vld [vmem:[#allocation2 + $0x1c8] sm:$0xff]
    %v113 = vld [vmem:[#allocation2 + $0x1d0] sm:$0xff]
    %v114 = vld [vmem:[#allocation2 + $0x1d8] sm:$0xff]
    %v115 = vld [vmem:[#allocation2 + $0x1e0] sm:$0xff]
    %v116 = vld [vmem:[#allocation2 + $0x1e8] sm:$0xff]
    %v117 = vld [vmem:[#allocation2 + $0x1f0] sm:$0xff]
    %v118 = vld [vmem:[#allocation2 + $0x1f8] sm:$0xff]
    %v119 = vld [vmem:[#allocation4] sm:$0xff]
    %v120 = vld [vmem:[#allocation4 + $0x8] sm:$0xff]
    %v121 = vld [vmem:[#allocation4 + $0x10] sm:$0xff]
    %v122 = vld [vmem:[#allocation4 + $0x18] sm:$0xff]
    %v123 = vld [vmem:[#allocation4 + $0x20] sm:$0xff]
    %v124 = vld [vmem:[#allocation4 + $0x28] sm:$0xff]
    %v125 = vld [vmem:[#allocation4 + $0x30] sm:$0xff]
    %v126 = vld [vmem:[#allocation4 + $0x38] sm:$0xff]
    %v127 = vld [vmem:[#allocation4 + $0x40] sm:$0xff]
    %v128 = vld [vmem:[#allocation4 + $0x48] sm:$0xff]
    %v129 = vld [vmem:[#allocation4 + $0x50] sm:$0xff]
    %v130 = vld [vmem:[#allocation4 + $0x58] sm:$0xff]
    %v131 = vld [vmem:[#allocation4 + $0x60] sm:$0xff]
    %v132 = vld [vmem:[#allocation4 + $0x68] sm:$0xff]
    %v133 = vld [vmem:[#allocation4 + $0x70] sm:$0xff]
    %v134 = vld [vmem:[#allocation4 + $0x78] sm:$0xff]
    %v135 = vld [vmem:[#allocation4 + $0x80] sm:$0xff]
    %v136 = vld [vmem:[#allocation4 + $0x88] sm:$0xff]
    %v137 = vld [vmem:[#allocation4 + $0x90] sm:$0xff]
    %v138 = vld [vmem:[#allocation4 + $0x98] sm:$0xff]
    %v139 = vld [vmem:[#allocation4 + $0xa0] sm:$0xff]
    %v140 = vld [vmem:[#allocation4 + $0xa8] sm:$0xff]
    %v141 = vld [vmem:[#allocation4 + $0xb0] sm:$0xff]
    %v142 = vld [vmem:[#allocation4 + $0xb8] sm:$0xff]
    %v143 = vld [vmem:[#allocation4 + $0xc0] sm:$0xff]
    %v144 = vld [vmem:[#allocation4 + $0xc8] sm:$0xff]
    %v145 = vld [vmem:[#allocation4 + $0xd0] sm:$0xff]
    %v146 = vld [vmem:[#allocation4 + $0xd8] sm:$0xff]
    %v147 = vld [vmem:[#allocation4 + $0xe0] sm:$0xff]
    %v148 = vld [vmem:[#allocation4 + $0xe8] sm:$0xff]
    %v149 = vld [vmem:[#allocation4 + $0xf0] sm:$0xff]
    %v150 = vld [vmem:[#allocation4 + $0xf8] sm:$0xff]
    %v151 = vld [vmem:[#allocation4 + $0x100] sm:$0xff]
    %v152 = vld [vmem:[#allocation4 + $0x108] sm:$0xff]
    %v153 = vld [vmem:[#allocation4 + $0x110] sm:$0xff]
    %v154 = vld [vmem:[#allocation4 + $0x118] sm:$0xff]
    %v155 = vld [vmem:[#allocation4 + $0x120] sm:$0xff]
    %v156 = vld [vmem:[#allocation4 + $0x128] sm:$0xff]
    %v157 = vld [vmem:[#allocation4 + $0x130] sm:$0xff]
    %v158 = vld [vmem:[#allocation4 + $0x138] sm:$0xff]
    %v159 = vld [vmem:[#allocation4 + $0x140] sm:$0xff]
    %v160 = vld [vmem:[#allocation4 + $0x148] sm:$0xff]
    %v161 = vld [vmem:[#allocation4 + $0x150] sm:$0xff]
    %v162 = vld [vmem:[#allocation4 + $0x158] sm:$0xff]
    %v163 = vld [vmem:[#allocation4 + $0x160] sm:$0xff]
    %v164 = vld [vmem:[#allocation4 + $0x168] sm:$0xff]
    %v165 = vld [vmem:[#allocation4 + $0x170] sm:$0xff]
    %v166 = vld [vmem:[#allocation4 + $0x178] sm:$0xff]
    %v167 = vld [vmem:[#allocation4 + $0x180] sm:$0xff]
    %v168 = vld [vmem:[#allocation4 + $0x188] sm:$0xff]
    %v169 = vld [vmem:[#allocation4 + $0x190] sm:$0xff]
    %v170 = vld [vmem:[#allocation4 + $0x198] sm:$0xff]
    %v171 = vld [vmem:[#allocation4 + $0x1a0] sm:$0xff]
    %v172 = vld [vmem:[#allocation4 + $0x1a8] sm:$0xff]
    %v173 = vld [vmem:[#allocation4 + $0x1b0] sm:$0xff]
    %v174 = vld [vmem:[#allocation4 + $0x1b8] sm:$0xff]
    %v175 = vld [vmem:[#allocation4 + $0x1c0] sm:$0xff]
    %v176 = vld [vmem:[#allocation4 + $0x1c8] sm:$0xff]
    %v177 = vld [vmem:[#allocation4 + $0x1d0] sm:$0xff]
    %v178 = vld [vmem:[#allocation4 + $0x1d8] sm:$0xff]
    %v179 = vld [vmem:[#allocation4 + $0x1e0] sm:$0xff]
    %v180 = vld [vmem:[#allocation4 + $0x1e8] sm:$0xff]
    %v181 = vld [vmem:[#allocation4 + $0x1f0] sm:$0xff]
    %v182 = vld [vmem:[#allocation4 + $0x1f8] sm:$0xff]
    %v183 = vld [vmem:[#allocation4 + $0x200] sm:$0xff]
    %v184 = vld [vmem:[#allocation4 + $0x208] sm:$0xff]
    %v185 = vld [vmem:[#allocation4 + $0x210] sm:$0xff]
    %v186 = vld [vmem:[#allocation4 + $0x218] sm:$0xff]
    %v187 = vld [vmem:[#allocation4 + $0x220] sm:$0xff]
    %v188 = vld [vmem:[#allocation4 + $0x228] sm:$0xff]
    %v189 = vld [vmem:[#allocation4 + $0x230] sm:$0xff]
    %v190 = vld [vmem:[#allocation4 + $0x238] sm:$0xff]
    %v191 = vld [vmem:[#allocation4 + $0x240] sm:$0xff]
    %v192 = vld [vmem:[#allocation4 + $0x248] sm:$0xff]
    %v193 = vld [vmem:[#allocation4 + $0x250] sm:$0xff]
    %v194 = vld [vmem:[#allocation4 + $0x258] sm:$0xff]
    %v195 = vld [vmem:[#allocation4 + $0x260] sm:$0xff]
    %v196 = vld [vmem:[#allocation4 + $0x268] sm:$0xff]
    %v197 = vld [vmem:[#allocation4 + $0x270] sm:$0xff]
    %v198 = vld [vmem:[#allocation4 + $0x278] sm:$0xff]
    %v199 = vld [vmem:[#allocation4 + $0x280] sm:$0xff]
    %v200 = vld [vmem:[#allocation4 + $0x288] sm:$0xff]
    %v201 = vld [vmem:[#allocation4 + $0x290] sm:$0xff]
    %v202 = vld [vmem:[#allocation4 + $0x298] sm:$0xff]
    %v203 = vld [vmem:[#allocation4 + $0x2a0] sm:$0xff]
    %v204 = vld [vmem:[#allocation4 + $0x2a8] sm:$0xff]
    %v205 = vld [vmem:[#allocation4 + $0x2b0] sm:$0xff]
    %v206 = vld [vmem:[#allocation4 + $0x2b8] sm:$0xff]
    %v207 = vld [vmem:[#allocation4 + $0x2c0] sm:$0xff]
    %v208 = vld [vmem:[#allocation4 + $0x2c8] sm:$0xff]
    %v209 = vld [vmem:[#allocation4 + $0x2d0] sm:$0xff]
    %v210 = vld [vmem:[#allocation4 + $0x2d8] sm:$0xff]
    %v211 = vld [vmem:[#allocation4 + $0x2e0] sm:$0xff]
    %v212 = vld [vmem:[#allocation4 + $0x2e8] sm:$0xff]
    %v213 = vld [vmem:[#allocation4 + $0x2f0] sm:$0xff]
    %v214 = vld [vmem:[#allocation4 + $0x2f8] sm:$0xff]
    %v215 = vld [vmem:[#allocation4 + $0x300] sm:$0xff]
    %v216 = vld [vmem:[#allocation4 + $0x308] sm:$0xff]
    %v217 = vld [vmem:[#allocation4 + $0x310] sm:$0xff]
    %v218 = vld [vmem:[#allocation4 + $0x318] sm:$0xff]
    %v219 = vld [vmem:[#allocation4 + $0x320] sm:$0xff]
    %v220 = vld [vmem:[#allocation4 + $0x328] sm:$0xff]
    %v221 = vld [vmem:[#allocation4 + $0x330] sm:$0xff]
    %v222 = vld [vmem:[#allocation4 + $0x338] sm:$0xff]
    %v223 = vld [vmem:[#allocation4 + $0x340] sm:$0xff]
    %v224 = vld [vmem:[#allocation4 + $0x348] sm:$0xff]
    %v225 = vld [vmem:[#allocation4 + $0x350] sm:$0xff]
    %v226 = vld [vmem:[#allocation4 + $0x358] sm:$0xff]
    %v227 = vld [vmem:[#allocation4 + $0x360] sm:$0xff]
    %v228 = vld [vmem:[#allocation4 + $0x368] sm:$0xff]
    %v229 = vld [vmem:[#allocation4 + $0x370] sm:$0xff]
    %v230 = vld [vmem:[#allocation4 + $0x378] sm:$0xff]
    %v231 = vld [vmem:[#allocation4 + $0x380] sm:$0xff]
    %v232 = vld [vmem:[#allocation4 + $0x388] sm:$0xff]
    %v233 = vld [vmem:[#allocation4 + $0x390] sm:$0xff]
    %v234 = vld [vmem:[#allocation4 + $0x398] sm:$0xff]
    %v235 = vld [vmem:[#allocation4 + $0x3a0] sm:$0xff]
    %v236 = vld [vmem:[#allocation4 + $0x3a8] sm:$0xff]
    %v237 = vld [vmem:[#allocation4 + $0x3b0] sm:$0xff]
    %v238 = vld [vmem:[#allocation4 + $0x3b8] sm:$0xff]
    %v239 = vld [vmem:[#allocation4 + $0x3c0] sm:$0xff]
    %v240 = vld [vmem:[#allocation4 + $0x3c8] sm:$0xff]
    %v241 = vld [vmem:[#allocation4 + $0x3d0] sm:$0xff]
    %v242 = vld [vmem:[#allocation4 + $0x3d8] sm:$0xff]
    %v243 = vld [vmem:[#allocation4 + $0x3e0] sm:$0xff]
    %vm244 = vcmask 850944
    %v246 = vsel %vm244, %v62, 0
    %v249 = vsel %vm244, %v70, 0
    %v252 = vsel %vm244, %v78, 0
    %v255 = vsel %vm244, %v86, 0
    %v258 = vsel %vm244, %v94, 0
    %v261 = vsel %vm244, %v102, 0
    %v264 = vsel %vm244, %v110, 0
    %v267 = vsel %vm244, %v118, 0
    %269 = vmatprep.subr.mxu0 0.0
    %270 = vmatpush1.msra.mxu0 %v119
    %271 = vmatprep.subr.mxu0 0.0
    %272 = vmatpush1.msra.mxu0 %v120
    %273 = vmatprep.subr.mxu0 0.0
    %274 = vmatpush1.msra.mxu0 %v121
    %275 = vmatprep.subr.mxu0 0.0
    %276 = vmatpush1.msra.mxu0 %v122
    %277 = vmatprep.subr.mxu0 0.0
    %278 = vmatpush1.msra.mxu0 %v123
    %279 = vmatprep.subr.mxu0 0.0
    %280 = vmatpush1.msra.mxu0 %v124
    %281 = vmatprep.subr.mxu0 0.0
    %282 = vmatpush1.msra.mxu0 %v125
    %283 = vmatprep.subr.mxu0 0.0
    %284 = vmatpush1.msra.mxu0 %v126
    %285 = vmatprep.subr.mxu0 0.0
    %286 = vmatpush1.msra.mxu0 %v127
    %287 = vmatprep.subr.mxu0 0.0
    %288 = vmatpush1.msra.mxu0 %v128
    %289 = vmatprep.subr.mxu0 0.0
    %290 = vmatpush1.msra.mxu0 %v129
    %291 = vmatprep.subr.mxu0 0.0
    %292 = vmatpush1.msra.mxu0 %v130
    %293 = vmatprep.subr.mxu0 0.0
    %294 = vmatpush1.msra.mxu0 %v131
    %295 = vmatprep.subr.mxu0 0.0
    %296 = vmatpush1.msra.mxu0 %v132
    %297 = vmatprep.subr.mxu0 0.0
    %298 = vmatpush1.msra.mxu0 %v133
    %299 = vmatprep.subr.mxu0 0.0
    %300 = vmatpush1.msra.mxu0 %v134
    %301 = vmatprep.subr.mxu0 0.0
    %302 = vmatpush1.msra.mxu0 %v135
    %303 = vmatprep.subr.mxu0 0.0
    %304 = vmatpush1.msra.mxu0 %v136
    %305 = vmatprep.subr.mxu0 0.0
    %306 = vmatpush1.msra.mxu0 %v137
    %307 = vmatprep.subr.mxu0 0.0
    %308 = vmatpush1.msra.mxu0 %v138
    %309 = vmatprep.subr.mxu0 0.0
    %310 = vmatpush1.msra.mxu0 %v139
    %311 = vmatprep.subr.mxu0 0.0
    %312 = vmatpush1.msra.mxu0 %v140
    %313 = vmatprep.subr.mxu0 0.0
    %314 = vmatpush1.msra.mxu0 %v141
    %315 = vmatprep.subr.mxu0 0.0
    %316 = vmatpush1.msra.mxu0 %v142
    %317 = vmatprep.subr.mxu0 0.0
    %318 = vmatpush1.msra.mxu0 %v143
    %319 = vmatprep.subr.mxu0 0.0
    %320 = vmatpush1.msra.mxu0 %v144
    %321 = vmatprep.subr.mxu0 0.0
    %322 = vmatpush1.msra.mxu0 %v145
    %323 = vmatprep.subr.mxu0 0.0
    %324 = vmatpush1.msra.mxu0 %v146
    %325 = vmatprep.subr.mxu0 0.0
    %326 = vmatpush1.msra.mxu0 %v147
    %327 = vmatprep.subr.mxu0 0.0
    %328 = vmatpush1.msra.mxu0 %v148
    %329 = vmatprep.subr.mxu0 0.0
    %330 = vmatpush1.msra.mxu0 %v149
    %331 = vmatprep.subr.mxu0 0.0
    %332 = vmatpush1.msra.mxu0 %v150
    %333 = vmatprep.mubr.f32.mxu0 %v56
    %334 = vmatmul.mubr.f32.gmra.mrb[0].mxu0 %v55
    %v335 = vpop.f32.mrb[0].mxu0
    %v336 = vadd.f32 0.0, %v335
    %v337 = vpop.f32.mrb[0].mxu0
    %338 = vmatprep.mubr.f32.mxu0 %v64
    %339 = vmatmul.mubr.f32.gmra.mrb[0].mxu0 %v63
    %v340 = vpop.f32.mrb[0].mxu0
    %v341 = vadd.f32 0.0, %v340
    %v342 = vpop.f32.mrb[0].mxu0
    %343 = vmatprep.mubr.f32.mxu0 %v72
    %344 = vmatmul.mubr.f32.gmra.mrb[0].mxu0 %v71
    %v345 = vpop.f32.mrb[0].mxu0
    %v346 = vadd.f32 0.0, %v345
    %v347 = vpop.f32.mrb[0].mxu0
    %348 = vmatprep.mubr.f32.mxu0 %v80
    %349 = vmatmul.mubr.f32.gmra.mrb[0].mxu0 %v79
    %v350 = vpop.f32.mrb[0].mxu0
    %v351 = vadd.f32 0.0, %v350
    %v352 = vpop.f32.mrb[0].mxu0
    %353 = vmatprep.mubr.f32.mxu0 %v88
    %354 = vmatmul.mubr.f32.gmra.mrb[0].mxu0 %v87
    %v355 = vpop.f32.mrb[0].mxu0
    %v356 = vadd.f32 0.0, %v355
    %v357 = vpop.f32.mrb[0].mxu0
    %358 = vmatprep.mubr.f32.mxu0 %v96
    %359 = vmatmul.mubr.f32.gmra.mrb[0].mxu0 %v95
    %v360 = vpop.f32.mrb[0].mxu0
    %v361 = vadd.f32 0.0, %v360
    %v362 = vpop.f32.mrb[0].mxu0
    %363 = vmatprep.mubr.f32.mxu0 %v104
    %364 = vmatmul.mubr.f32.gmra.mrb[0].mxu0 %v103
    %v365 = vpop.f32.mrb[0].mxu0
    %v366 = vadd.f32 0.0, %v365
    %v367 = vpop.f32.mrb[0].mxu0
    %368 = vmatprep.mubr.f32.mxu0 %v112
    %369 = vmatmul.mubr.f32.gmra.mrb[0].mxu0 %v111
    %v370 = vpop.f32.mrb[0].mxu0
    %v371 = vadd.f32 0.0, %v370
    %v372 = vpop.f32.mrb[0].mxu0
    %373 = vdwg.mxu0
    %374 = vmatprep.subr.mxu0 0.0
    %375 = vmatpush1.msra.mxu0 %v151
    %376 = vmatprep.subr.mxu0 0.0
    %377 = vmatpush1.msra.mxu0 %v152
    %378 = vmatprep.subr.mxu0 0.0
    %379 = vmatpush1.msra.mxu0 %v153
    %380 = vmatprep.subr.mxu0 0.0
    %381 = vmatpush1.msra.mxu0 %v154
    %382 = vmatprep.subr.mxu0 0.0
    %383 = vmatpush1.msra.mxu0 %v155
    %384 = vmatprep.subr.mxu0 0.0
    %385 = vmatpush1.msra.mxu0 %v156
    %386 = vmatprep.subr.mxu0 0.0
    %387 = vmatpush1.msra.mxu0 %v157
    %388 = vmatprep.subr.mxu0 0.0
    %389 = vmatpush1.msra.mxu0 %v158
    %390 = vmatprep.subr.mxu0 0.0
    %391 = vmatpush1.msra.mxu0 %v159
    %392 = vmatprep.subr.mxu0 0.0
    %393 = vmatpush1.msra.mxu0 %v160
    %394 = vmatprep.subr.mxu0 0.0
    %395 = vmatpush1.msra.mxu0 %v161
    %396 = vmatprep.subr.mxu0 0.0
    %397 = vmatpush1.msra.mxu0 %v162
    %398 = vmatprep.subr.mxu0 0.0
    %399 = vmatpush1.msra.mxu0 %v163
    %400 = vmatprep.subr.mxu0 0.0
    %401 = vmatpush1.msra.mxu0 %v164
    %402 = vmatprep.subr.mxu0 0.0
    %403 = vmatpush1.msra.mxu0 %v165
    %404 = vmatprep.subr.mxu0 0.0
    %405 = vmatpush1.msra.mxu0 %v166
    %406 = vmatprep.subr.mxu0 0.0
    %407 = vmatpush1.msra.mxu0 %v167
    %408 = vmatprep.subr.mxu0 0.0
    %409 = vmatpush1.msra.mxu0 %v168
    %410 = vmatprep.subr.mxu0 0.0
    %411 = vmatpush1.msra.mxu0 %v169
    %412 = vmatprep.subr.mxu0 0.0
    %413 = vmatpush1.msra.mxu0 %v170
    %414 = vmatprep.subr.mxu0 0.0
    %415 = vmatpush1.msra.mxu0 %v171
    %416 = vmatprep.subr.mxu0 0.0
    %417 = vmatpush1.msra.mxu0 %v172
    %418 = vmatprep.subr.mxu0 0.0
    %419 = vmatpush1.msra.mxu0 %v173
    %420 = vmatprep.subr.mxu0 0.0
    %421 = vmatpush1.msra.mxu0 %v174
    %422 = vmatprep.subr.mxu0 0.0
    %423 = vmatpush1.msra.mxu0 %v175
    %424 = vmatprep.subr.mxu0 0.0
    %425 = vmatpush1.msra.mxu0 %v176
    %426 = vmatprep.subr.mxu0 0.0
    %427 = vmatpush1.msra.mxu0 %v177
    %428 = vmatprep.subr.mxu0 0.0
    %429 = vmatpush1.msra.mxu0 %v178
    %430 = vmatprep.subr.mxu0 0.0
    %431 = vmatpush1.msra.mxu0 %v179
    %432 = vmatprep.subr.mxu0 0.0
    %433 = vmatpush1.msra.mxu0 %v180
    %434 = vmatprep.subr.mxu0 0.0
    %435 = vmatpush1.msra.mxu0 %v181
    %436 = vmatprep.subr.mxu0 0.0
    %437 = vmatpush1.msra.mxu0 %v182
    %438 = vmatprep.mubr.f32.mxu0 %v58
    %439 = vmatmul.mubr.f32.gmra.mrb[0].mxu0 %v57
    %v440 = vpop.f32.mrb[0].mxu0
    %v441 = vadd.f32 %v336, %v440
    %v442 = vpop.f32.mrb[0].mxu0
    %443 = vmatprep.mubr.f32.mxu0 %v66
    %444 = vmatmul.mubr.f32.gmra.mrb[0].mxu0 %v65
    %v445 = vpop.f32.mrb[0].mxu0
    %v446 = vadd.f32 %v341, %v445
    %v447 = vpop.f32.mrb[0].mxu0
    %448 = vmatprep.mubr.f32.mxu0 %v74
    %449 = vmatmul.mubr.f32.gmra.mrb[0].mxu0 %v73
    %v450 = vpop.f32.mrb[0].mxu0
    %v451 = vadd.f32 %v346, %v450
    %v452 = vpop.f32.mrb[0].mxu0
    %453 = vmatprep.mubr.f32.mxu0 %v82
    %454 = vmatmul.mubr.f32.gmra.mrb[0].mxu0 %v81
    %v455 = vpop.f32.mrb[0].mxu0
    %v456 = vadd.f32 %v351, %v455
    %v457 = vpop.f32.mrb[0].mxu0
    %458 = vmatprep.mubr.f32.mxu0 %v90
    %459 = vmatmul.mubr.f32.gmra.mrb[0].mxu0 %v89
    %v460 = vpop.f32.mrb[0].mxu0
    %v461 = vadd.f32 %v356, %v460
    %v462 = vpop.f32.mrb[0].mxu0
    %463 = vmatprep.mubr.f32.mxu0 %v98
    %464 = vmatmul.mubr.f32.gmra.mrb[0].mxu0 %v97
    %v465 = vpop.f32.mrb[0].mxu0
    %v466 = vadd.f32 %v361, %v465
    %v467 = vpop.f32.mrb[0].mxu0
    %468 = vmatprep.mubr.f32.mxu0 %v106
    %469 = vmatmul.mubr.f32.gmra.mrb[0].mxu0 %v105
    %v470 = vpop.f32.mrb[0].mxu0
    %v471 = vadd.f32 %v366, %v470
    %v472 = vpop.f32.mrb[0].mxu0
    %473 = vmatprep.mubr.f32.mxu0 %v114
    %474 = vmatmul.mubr.f32.gmra.mrb[0].mxu0 %v113
    %v475 = vpop.f32.mrb[0].mxu0
    %v476 = vadd.f32 %v371, %v475
    %v477 = vpop.f32.mrb[0].mxu0
    %478 = vdwg.mxu0
    %479 = vmatprep.subr.mxu0 0.0
    %480 = vmatpush1.msra.mxu0 %v183
    %481 = vmatprep.subr.mxu0 0.0
    %482 = vmatpush1.msra.mxu0 %v184
    %483 = vmatprep.subr.mxu0 0.0
    %484 = vmatpush1.msra.mxu0 %v185
    %485 = vmatprep.subr.mxu0 0.0
    %486 = vmatpush1.msra.mxu0 %v186
    %487 = vmatprep.subr.mxu0 0.0
    %488 = vmatpush1.msra.mxu0 %v187
    %489 = vmatprep.subr.mxu0 0.0
    %490 = vmatpush1.msra.mxu0 %v188
    %491 = vmatprep.subr.mxu0 0.0
    %492 = vmatpush1.msra.mxu0 %v189
    %493 = vmatprep.subr.mxu0 0.0
    %494 = vmatpush1.msra.mxu0 %v190
    %495 = vmatprep.subr.mxu0 0.0
    %496 = vmatpush1.msra.mxu0 %v191
    %497 = vmatprep.subr.mxu0 0.0
    %498 = vmatpush1.msra.mxu0 %v192
    %499 = vmatprep.subr.mxu0 0.0
    %500 = vmatpush1.msra.mxu0 %v193
    %501 = vmatprep.subr.mxu0 0.0
    %502 = vmatpush1.msra.mxu0 %v194
    %503 = vmatprep.subr.mxu0 0.0
    %504 = vmatpush1.msra.mxu0 %v195
    %505 = vmatprep.subr.mxu0 0.0
    %506 = vmatpush1.msra.mxu0 %v196
    %507 = vmatprep.subr.mxu0 0.0
    %508 = vmatpush1.msra.mxu0 %v197
    %509 = vmatprep.subr.mxu0 0.0
    %510 = vmatpush1.msra.mxu0 %v198
    %511 = vmatprep.subr.mxu0 0.0
    %512 = vmatpush1.msra.mxu0 %v199
    %513 = vmatprep.subr.mxu0 0.0
    %514 = vmatpush1.msra.mxu0 %v200
    %515 = vmatprep.subr.mxu0 0.0
    %516 = vmatpush1.msra.mxu0 %v201
    %517 = vmatprep.subr.mxu0 0.0
    %518 = vmatpush1.msra.mxu0 %v202
    %519 = vmatprep.subr.mxu0 0.0
    %520 = vmatpush1.msra.mxu0 %v203
    %521 = vmatprep.subr.mxu0 0.0
    %522 = vmatpush1.msra.mxu0 %v204
    %523 = vmatprep.subr.mxu0 0.0
    %524 = vmatpush1.msra.mxu0 %v205
    %525 = vmatprep.subr.mxu0 0.0
    %526 = vmatpush1.msra.mxu0 %v206
    %527 = vmatprep.subr.mxu0 0.0
    %528 = vmatpush1.msra.mxu0 %v207
    %529 = vmatprep.subr.mxu0 0.0
    %530 = vmatpush1.msra.mxu0 %v208
    %531 = vmatprep.subr.mxu0 0.0
    %532 = vmatpush1.msra.mxu0 %v209
    %533 = vmatprep.subr.mxu0 0.0
    %534 = vmatpush1.msra.mxu0 %v210
    %535 = vmatprep.subr.mxu0 0.0
    %536 = vmatpush1.msra.mxu0 %v211
    %537 = vmatprep.subr.mxu0 0.0
    %538 = vmatpush1.msra.mxu0 %v212
    %539 = vmatprep.subr.mxu0 0.0
    %540 = vmatpush1.msra.mxu0 %v213
    %541 = vmatprep.subr.mxu0 0.0
    %542 = vmatpush1.msra.mxu0 %v214
    %543 = vmatprep.mubr.f32.mxu0 %v60
    %544 = vmatmul.mubr.f32.gmra.mrb[0].mxu0 %v59
    %v545 = vpop.f32.mrb[0].mxu0
    %v546 = vadd.f32 %v441, %v545
    %v547 = vpop.f32.mrb[0].mxu0
    %548 = vmatprep.mubr.f32.mxu0 %v68
    %549 = vmatmul.mubr.f32.gmra.mrb[0].mxu0 %v67
    %v550 = vpop.f32.mrb[0].mxu0
    %v551 = vadd.f32 %v446, %v550
    %v552 = vpop.f32.mrb[0].mxu0
    %553 = vmatprep.mubr.f32.mxu0 %v76
    %554 = vmatmul.mubr.f32.gmra.mrb[0].mxu0 %v75
    %v555 = vpop.f32.mrb[0].mxu0
    %v556 = vadd.f32 %v451, %v555
    %v557 = vpop.f32.mrb[0].mxu0
    %558 = vmatprep.mubr.f32.mxu0 %v84
    %559 = vmatmul.mubr.f32.gmra.mrb[0].mxu0 %v83
    %v560 = vpop.f32.mrb[0].mxu0
    %v561 = vadd.f32 %v456, %v560
    %v562 = vpop.f32.mrb[0].mxu0
    %563 = vmatprep.mubr.f32.mxu0 %v92
    %564 = vmatmul.mubr.f32.gmra.mrb[0].mxu0 %v91
    %v565 = vpop.f32.mrb[0].mxu0
    %v566 = vadd.f32 %v461, %v565
    %v567 = vpop.f32.mrb[0].mxu0
    %568 = vmatprep.mubr.f32.mxu0 %v100
    %569 = vmatmul.mubr.f32.gmra.mrb[0].mxu0 %v99
    %v570 = vpop.f32.mrb[0].mxu0
    %v571 = vadd.f32 %v466, %v570
    %v572 = vpop.f32.mrb[0].mxu0
    %573 = vmatprep.mubr.f32.mxu0 %v108
    %574 = vmatmul.mubr.f32.gmra.mrb[0].mxu0 %v107
    %v575 = vpop.f32.mrb[0].mxu0
    %v576 = vadd.f32 %v471, %v575
    %v577 = vpop.f32.mrb[0].mxu0
    %578 = vmatprep.mubr.f32.mxu0 %v116
    %579 = vmatmul.mubr.f32.gmra.mrb[0].mxu0 %v115
    %v580 = vpop.f32.mrb[0].mxu0
    %v581 = vadd.f32 %v476, %v580
    %v582 = vpop.f32.mrb[0].mxu0
    %583 = vdwg.mxu0
    %584 = vmatprep.subr.mxu0 0.0
    %585 = vmatpush1.msra.mxu0 %v215
    %586 = vmatprep.subr.mxu0 0.0
    %587 = vmatpush1.msra.mxu0 %v216
    %588 = vmatprep.subr.mxu0 0.0
    %589 = vmatpush1.msra.mxu0 %v217
    %590 = vmatprep.subr.mxu0 0.0
    %591 = vmatpush1.msra.mxu0 %v218
    %592 = vmatprep.subr.mxu0 0.0
    %593 = vmatpush1.msra.mxu0 %v219
    %594 = vmatprep.subr.mxu0 0.0
    %595 = vmatpush1.msra.mxu0 %v220
    %596 = vmatprep.subr.mxu0 0.0
    %597 = vmatpush1.msra.mxu0 %v221
    %598 = vmatprep.subr.mxu0 0.0
    %599 = vmatpush1.msra.mxu0 %v222
    %600 = vmatprep.subr.mxu0 0.0
    %601 = vmatpush1.msra.mxu0 %v223
    %602 = vmatprep.subr.mxu0 0.0
    %603 = vmatpush1.msra.mxu0 %v224
    %604 = vmatprep.subr.mxu0 0.0
    %605 = vmatpush1.msra.mxu0 %v225
    %606 = vmatprep.subr.mxu0 0.0
    %607 = vmatpush1.msra.mxu0 %v226
    %608 = vmatprep.subr.mxu0 0.0
    %609 = vmatpush1.msra.mxu0 %v227
    %610 = vmatprep.subr.mxu0 0.0
    %611 = vmatpush1.msra.mxu0 %v228
    %612 = vmatprep.subr.mxu0 0.0
    %613 = vmatpush1.msra.mxu0 %v229
    %614 = vmatprep.subr.mxu0 0.0
    %615 = vmatpush1.msra.mxu0 %v230
    %616 = vmatprep.subr.mxu0 0.0
    %617 = vmatpush1.msra.mxu0 %v231
    %618 = vmatprep.subr.mxu0 0.0
    %619 = vmatpush1.msra.mxu0 %v232
    %620 = vmatprep.subr.mxu0 0.0
    %621 = vmatpush1.msra.mxu0 %v233
    %622 = vmatprep.subr.mxu0 0.0
    %623 = vmatpush1.msra.mxu0 %v234
    %624 = vmatprep.subr.mxu0 0.0
    %625 = vmatpush1.msra.mxu0 %v235
    %626 = vmatprep.subr.mxu0 0.0
    %627 = vmatpush1.msra.mxu0 %v236
    %628 = vmatprep.subr.mxu0 0.0
    %629 = vmatpush1.msra.mxu0 %v237
    %630 = vmatprep.subr.mxu0 0.0
    %631 = vmatpush1.msra.mxu0 %v238
    %632 = vmatprep.subr.mxu0 0.0
    %633 = vmatpush1.msra.mxu0 %v239
    %634 = vmatprep.subr.mxu0 0.0
    %635 = vmatpush1.msra.mxu0 %v240
    %636 = vmatprep.subr.mxu0 0.0
    %637 = vmatpush1.msra.mxu0 %v241
    %638 = vmatprep.subr.mxu0 0.0
    %639 = vmatpush1.msra.mxu0 %v242
    %640 = vmatprep.subr.mxu0 0.0
    %641 = vmatpush1.msra.mxu0 %v243
    %642 = vmatprep.subr.mxu0 0.0
    %643 = vmatpush1.msra.mxu0 0.0
    %644 = vmatprep.subr.mxu0 0.0
    %645 = vmatpush1.msra.mxu0 0.0
    %646 = vmatprep.subr.mxu0 0.0
    %647 = vmatpush1.msra.mxu0 0.0
    %648 = vmatprep.mubr.f32.mxu0 %v246
    %649 = vmatmul.mubr.f32.gmra.mrb[0].mxu0 %v61
    %v650 = vpop.f32.mrb[0].mxu0
    %v651 = vadd.f32 %v546, %v650
    %v652 = vpop.f32.mrb[0].mxu0
    %653 = vmatprep.mubr.f32.mxu0 %v249
    %654 = vmatmul.mubr.f32.gmra.mrb[0].mxu0 %v69
    %v655 = vpop.f32.mrb[0].mxu0
    %v656 = vadd.f32 %v551, %v655
    %v657 = vpop.f32.mrb[0].mxu0
    %658 = vmatprep.mubr.f32.mxu0 %v252
    %659 = vmatmul.mubr.f32.gmra.mrb[0].mxu0 %v77
    %v660 = vpop.f32.mrb[0].mxu0
    %v661 = vadd.f32 %v556, %v660
    %v662 = vpop.f32.mrb[0].mxu0
    %663 = vmatprep.mubr.f32.mxu0 %v255
    %664 = vmatmul.mubr.f32.gmra.mrb[0].mxu0 %v85
    %v665 = vpop.f32.mrb[0].mxu0
    %v666 = vadd.f32 %v561, %v665
    %v667 = vpop.f32.mrb[0].mxu0
    %668 = vmatprep.mubr.f32.mxu0 %v258
    %669 = vmatmul.mubr.f32.gmra.mrb[0].mxu0 %v93
    %v670 = vpop.f32.mrb[0].mxu0
    %v671 = vadd.f32 %v566, %v670
    %v672 = vpop.f32.mrb[0].mxu0
    %673 = vmatprep.mubr.f32.mxu0 %v261
    %674 = vmatmul.mubr.f32.gmra.mrb[0].mxu0 %v101
    %v675 = vpop.f32.mrb[0].mxu0
    %v676 = vadd.f32 %v571, %v675
    %v677 = vpop.f32.mrb[0].mxu0
    %678 = vmatprep.mubr.f32.mxu0 %v264
    %679 = vmatmul.mubr.f32.gmra.mrb[0].mxu0 %v109
    %v680 = vpop.f32.mrb[0].mxu0
    %v681 = vadd.f32 %v576, %v680
    %v682 = vpop.f32.mrb[0].mxu0
    %683 = vmatprep.mubr.f32.mxu0 %v267
    %684 = vmatmul.mubr.f32.gmra.mrb[0].mxu0 %v117
    %v685 = vpop.f32.mrb[0].mxu0
    %v686 = vadd.f32 %v581, %v685
    %v687 = vpop.f32.mrb[0].mxu0
    %688 = vdwg.mxu0
    %v689 = vmax.f32 %v651, 0.0
    %v690 = vmax.f32 %v656, 0.0
    %v691 = vmax.f32 %v661, 0.0
    %v692 = vmax.f32 %v666, 0.0
    %v693 = vmax.f32 %v671, 0.0
    %v694 = vmax.f32 %v676, 0.0
    %v695 = vmax.f32 %v681, 0.0
    %v696 = vmax.f32 %v686, 0.0
    %v697 = vld [vmem:[#allocation6] sm:$0xff]
    %v698 = vld [vmem:[#allocation6 + $0x8] sm:$0xff]
    %v699 = vld [vmem:[#allocation6 + $0x10] sm:$0xff]
    %v700 = vld [vmem:[#allocation6 + $0x18] sm:$0xff]
    %v701 = vld [vmem:[#allocation6 + $0x20] sm:$0xff]
    %v702 = vld [vmem:[#allocation6 + $0x28] sm:$0xff]
    %v703 = vld [vmem:[#allocation6 + $0x30] sm:$0xff]
    %v704 = vld [vmem:[#allocation6 + $0x38] sm:$0xff]
    %v705 = vld [vmem:[#allocation6 + $0x40] sm:$0xff]
    %v706 = vld [vmem:[#allocation6 + $0x48] sm:$0xff]
    %v707 = vld [vmem:[#allocation6 + $0x50] sm:$0xff]
    %v708 = vld [vmem:[#allocation6 + $0x58] sm:$0xff]
    %v709 = vld [vmem:[#allocation6 + $0x60] sm:$0xff]
    %v710 = vld [vmem:[#allocation6 + $0x68] sm:$0xff]
    %v711 = vld [vmem:[#allocation6 + $0x70] sm:$0xff]
    %v712 = vld [vmem:[#allocation6 + $0x78] sm:$0xff]
    %713 = vmatprep.subr.mxu0 0.0
    %714 = vmatpush1.msra.mxu0 %v697
    %715 = vmatprep.subr.mxu0 0.0
    %716 = vmatpush1.msra.mxu0 %v698
    %717 = vmatprep.subr.mxu0 0.0
    %718 = vmatpush1.msra.mxu0 %v699
    %719 = vmatprep.subr.mxu0 0.0
    %720 = vmatpush1.msra.mxu0 %v700
    %721 = vmatprep.subr.mxu0 0.0
    %722 = vmatpush1.msra.mxu0 %v701
    %723 = vmatprep.subr.mxu0 0.0
    %724 = vmatpush1.msra.mxu0 %v702
    %725 = vmatprep.subr.mxu0 0.0
    %726 = vmatpush1.msra.mxu0 %v703
    %727 = vmatprep.subr.mxu0 0.0
    %728 = vmatpush1.msra.mxu0 %v704
    %729 = vmatprep.subr.mxu0 0.0
    %730 = vmatpush1.msra.mxu0 %v705
    %731 = vmatprep.subr.mxu0 0.0
    %732 = vmatpush1.msra.mxu0 %v706
    %733 = vmatprep.subr.mxu0 0.0
    %734 = vmatpush1.msra.mxu0 %v707
    %735 = vmatprep.subr.mxu0 0.0
    %736 = vmatpush1.msra.mxu0 %v708
    %737 = vmatprep.subr.mxu0 0.0
    %738 = vmatpush1.msra.mxu0 %v709
    %739 = vmatprep.subr.mxu0 0.0
    %740 = vmatpush1.msra.mxu0 %v710
    %741 = vmatprep.subr.mxu0 0.0
    %742 = vmatpush1.msra.mxu0 %v711
    %743 = vmatprep.subr.mxu0 0.0
    %744 = vmatpush1.msra.mxu0 %v712
    %745 = vmatprep.subr.mxu0 0.0
    %746 = vmatpush1.msra.mxu0 0.0
    %747 = vmatprep.subr.mxu0 0.0
    %748 = vmatpush1.msra.mxu0 0.0
    %749 = vmatprep.subr.mxu0 0.0
    %750 = vmatpush1.msra.mxu0 0.0
    %751 = vmatprep.subr.mxu0 0.0
    %752 = vmatpush1.msra.mxu0 0.0
    %753 = vmatprep.subr.mxu0 0.0
    %754 = vmatpush1.msra.mxu0 0.0
    %755 = vmatprep.subr.mxu0 0.0
    %756 = vmatpush1.msra.mxu0 0.0
    %757 = vmatprep.subr.mxu0 0.0
    %758 = vmatpush1.msra.mxu0 0.0
    %759 = vmatprep.subr.mxu0 0.0
    %760 = vmatpush1.msra.mxu0 0.0
    %761 = vmatprep.subr.mxu0 0.0
    %762 = vmatpush1.msra.mxu0 0.0
    %763 = vmatprep.subr.mxu0 0.0
    %764 = vmatpush1.msra.mxu0 0.0
    %765 = vmatprep.subr.mxu0 0.0
    %766 = vmatpush1.msra.mxu0 0.0
    %767 = vmatprep.subr.mxu0 0.0
    %768 = vmatpush1.msra.mxu0 0.0
    %769 = vmatprep.subr.mxu0 0.0
    %770 = vmatpush1.msra.mxu0 0.0
    %771 = vmatprep.subr.mxu0 0.0
    %772 = vmatpush1.msra.mxu0 0.0
    %773 = vmatprep.subr.mxu0 0.0
    %774 = vmatpush1.msra.mxu0 0.0
    %775 = vmatprep.subr.mxu0 0.0
    %776 = vmatpush1.msra.mxu0 0.0
    %777 = vmatprep.mubr.f32.mxu0 0.0
    %778 = vmatmul.mubr.f32.gmra.mrb[0].mxu0 %v689
    %v779 = vpop.f32.mrb[0].mxu0
    %v780 = vadd.f32 0.0, %v779
    %v781 = vpop.f32.mrb[0].mxu0
    %782 = vmatprep.mubr.f32.mxu0 0.0
    %783 = vmatmul.mubr.f32.gmra.mrb[0].mxu0 %v690
    %v784 = vpop.f32.mrb[0].mxu0
    %v785 = vadd.f32 0.0, %v784
    %v786 = vpop.f32.mrb[0].mxu0
    %787 = vmatprep.mubr.f32.mxu0 0.0
    %788 = vmatmul.mubr.f32.gmra.mrb[0].mxu0 %v691
    %v789 = vpop.f32.mrb[0].mxu0
    %v790 = vadd.f32 0.0, %v789
    %v791 = vpop.f32.mrb[0].mxu0
    %792 = vmatprep.mubr.f32.mxu0 0.0
    %793 = vmatmul.mubr.f32.gmra.mrb[0].mxu0 %v692
    %v794 = vpop.f32.mrb[0].mxu0
    %v795 = vadd.f32 0.0, %v794
    %v796 = vpop.f32.mrb[0].mxu0
    %797 = vmatprep.mubr.f32.mxu0 0.0
    %798 = vmatmul.mubr.f32.gmra.mrb[0].mxu0 %v693
    %v799 = vpop.f32.mrb[0].mxu0
    %v800 = vadd.f32 0.0, %v799
    %v801 = vpop.f32.mrb[0].mxu0
    %802 = vmatprep.mubr.f32.mxu0 0.0
    %803 = vmatmul.mubr.f32.gmra.mrb[0].mxu0 %v694
    %v804 = vpop.f32.mrb[0].mxu0
    %v805 = vadd.f32 0.0, %v804
    %v806 = vpop.f32.mrb[0].mxu0
    %807 = vmatprep.mubr.f32.mxu0 0.0
    %808 = vmatmul.mubr.f32.gmra.mrb[0].mxu0 %v695
    %v809 = vpop.f32.mrb[0].mxu0
    %v810 = vadd.f32 0.0, %v809
    %v811 = vpop.f32.mrb[0].mxu0
    %812 = vmatprep.mubr.f32.mxu0 0.0
    %813 = vmatmul.mubr.f32.gmra.mrb[0].mxu0 %v696
    %v814 = vpop.f32.mrb[0].mxu0
    %v815 = vadd.f32 0.0, %v814
    %v816 = vpop.f32.mrb[0].mxu0
    %817 = vdwg.mxu0
    %818 = vst [vmem:[%s3] sm:$0xff] %v780
    %819 = vst [vmem:[%s3 + $0x8] sm:$0xff] %v785
    %820 = vst [vmem:[%s3 + $0x10] sm:$0xff] %v790
    %821 = vst [vmem:[%s3 + $0x18] sm:$0xff] %v795
    %822 = vst [vmem:[%s3 + $0x20] sm:$0xff] %v800
    %823 = vst [vmem:[%s3 + $0x28] sm:$0xff] %v805
    %824 = vst [vmem:[%s3 + $0x30] sm:$0xff] %v810
    %825 = vst [vmem:[%s3 + $0x38] sm:$0xff] %v815
    // Predicated region
    $region26: #{_forward_impl.1} parent=1 // pred_check
      _
    $region27: #{_forward_impl.1} parent=1 // pred_check_branch
      %827 = sbr.rel (0) target = $region29
    $region28: #{_forward_impl.1} parent=1 // pred_region
      _
    $region29: #{_forward_impl.1} parent=1 // pred_fallthru
      _
    // Predicated region
    $region30: #{_forward_impl.1} parent=1 // pred_check
      _
    $region31: #{_forward_impl.1} parent=1 // pred_check_branch
      %829 = sbr.rel (0) target = $region33
    $region32: #{_forward_impl.1} parent=1 // pred_region
      _
    $region33: #{_forward_impl.1} parent=1 // pred_fallthru
      _
    %830 = vsyncpa [#allocation3], 1
    %831 = vsyncpa [#allocation5], 1

</llo_original>
